<compile_context>
chip_gen: v5e
topology: v5e:2x2
jax: 0.10.0
libtpu: 0.0.40
codegen_flags: <defaults>
</compile_context>

<pallas_src>
import functools

import jax
import jax.numpy as jnp
from jax.experimental import pallas as pl
from jax.experimental.pallas import tpu as pltpu

LANE = 128  # padded channel width (lane-dense compute + stores)


# ----------------------------- Pallas kernel ------------------------------ #
def fused_sage_kernel(a_ref, x_ref, wl_ref, wr_ref, b_ref, o_ref, *,
                      n, support_len, order, lane):
    """Full support_len x order SAGE chain in a single kernel invocation.

    a_ref : [S*N, N]            f32 row-normalized mean-aggregation matrices
                                (support s occupies rows s*N:(s+1)*N)
    x_ref : [N, LANE]           f32 node features, zero-padded to 128 lanes
    wl_ref: [S*order, LANE, LANE] f32 lin_l weights (padded), row s*order+k
    wr_ref: [S*order, LANE, LANE] f32 lin_r weights (padded)
    b_ref : [S*order, LANE]     f32 lin_l biases   (padded)
    o_ref : [N, S*LANE]         f32 final-layer output per support (lane-dense)
    """
    x = x_ref[...]                     # (N, LANE)
    a_all = a_ref[...]                 # (S*N, N)

    # Layer 0: one batched (S*N, N) @ (N, LANE) aggregation — all supports use
    # h = x, so a single MXU push with M = S*N rows covers them.
    agg0 = jnp.dot(a_all, x, preferred_element_type=jnp.float32)   # (S*N, LANE)

    hs = []
    for s in range(support_len):
        idx = s * order
        agg = agg0[s * n:(s + 1) * n]                               # (N, LANE)
        z = (jnp.dot(agg, wl_ref[idx], preferred_element_type=jnp.float32)
             + jnp.dot(x, wr_ref[idx], preferred_element_type=jnp.float32)
             + b_ref[idx:idx + 1, :])
        hs.append(jnp.maximum(z, 0.0))
        # dropout: no-op in eval mode

    # Remaining layers: per-support (h differs per support now).
    for k in range(1, order):
        for s in range(support_len):
            idx = s * order + k
            h = hs[s]
            a_s = a_all[s * n:(s + 1) * n]                          # (N, N)
            agg = jnp.dot(a_s, h, preferred_element_type=jnp.float32)
            z = (jnp.dot(agg, wl_ref[idx], preferred_element_type=jnp.float32)
                 + jnp.dot(h, wr_ref[idx], preferred_element_type=jnp.float32)
                 + b_ref[idx:idx + 1, :])
            hs[s] = jnp.maximum(z, 0.0)

    # Lane-dense stores at 128-aligned offsets (unmasked full-lane vst).
    for s in range(support_len):
        o_ref[:, s * lane:(s + 1) * lane] = hs[s]


# ------------------------------- JAX glue ---------------------------------- #
def mean_agg_matrix(edge_index, n):
    """Dense row-normalized aggregation matrix A with A[i, j] = 1/deg_in(i)
    for each edge j -> i (PyG source_to_target flow, mean aggregation)."""
    src = edge_index[0]
    dst = edge_index[1]
    a = jnp.zeros((n, n), jnp.float32).at[dst, src].add(1.0)
    deg = a.sum(axis=1, keepdims=True)
    return jnp.where(deg > 0, a / jnp.maximum(deg, 1.0), 0.0)


def init_params(key, c_in, c_out, support_len=3, order=2):
    """Deterministic parameter init mirroring the module's shapes."""
    params = []
    for _ in range(support_len):
        layers = []
        for k in range(order):
            cin_k = c_in if k == 0 else c_out
            key, k1, k2, k3 = jax.random.split(key, 4)
            scale = 1.0 / jnp.sqrt(jnp.float32(cin_k))
            wl = jax.random.uniform(k1, (cin_k, c_out), jnp.float32, -scale, scale)
            wr = jax.random.uniform(k2, (cin_k, c_out), jnp.float32, -scale, scale)
            b = jax.random.uniform(k3, (c_out,), jnp.float32, -scale, scale)
            layers.append((wl, wr, b))
        params.append(layers)
    return params


def graph_sage_forward(x, edge_index_list, params):
    """x: [N, c_in] -> [N, c_in + support_len * c_out]."""
    n, c_in = x.shape
    support_len = len(edge_index_list)
    order = len(params[0])
    c_out = params[0][0][0].shape[1]
    cp = LANE

    # Stacked (f32) aggregation matrices, flattened along rows: (S*N, N).
    a_flat = jnp.concatenate(
        [mean_agg_matrix(ei, n) for ei in edge_index_list], axis=0)

    # Zero-pad features to 128 lanes.
    x_pad = jnp.zeros((n, cp), jnp.float32).at[:, :c_in].set(x)

    # Per-(support, layer) weights / bias, zero-padded to LANE, kept split.
    wl_rows, wr_rows, b_rows = [], [], []
    for s in range(support_len):
        for k in range(order):
            wl, wr, b = params[s][k]
            cin_k = wl.shape[0]
            wl_rows.append(jnp.zeros((cp, cp), jnp.float32).at[:cin_k, :c_out].set(wl))
            wr_rows.append(jnp.zeros((cp, cp), jnp.float32).at[:cin_k, :c_out].set(wr))
            b_rows.append(jnp.zeros((cp,), jnp.float32).at[:c_out].set(b))
    wl_stack = jnp.stack(wl_rows)        # [S*order, LANE, LANE]
    wr_stack = jnp.stack(wr_rows)        # [S*order, LANE, LANE]
    b_stack = jnp.stack(b_rows)          # [S*order, LANE]

    flops = support_len * order * (2 * n * n * cp + 2 * (2 * n * cp * cp))
    bytes_accessed = 4 * (a_flat.size + x_pad.size + wl_stack.size
                          + wr_stack.size + b_stack.size
                          + n * support_len * cp)

    out_slab = pl.pallas_call(
        functools.partial(fused_sage_kernel, n=n, support_len=support_len,
                          order=order, lane=cp),
        out_shape=jax.ShapeDtypeStruct((n, support_len * cp), jnp.float32),
        grid=(1,),
        in_specs=[
            pl.BlockSpec((support_len * n, n), lambda i: (0, 0)),
            pl.BlockSpec((n, cp), lambda i: (0, 0)),
            pl.BlockSpec((support_len * order, cp, cp), lambda i: (0, 0, 0)),
            pl.BlockSpec((support_len * order, cp, cp), lambda i: (0, 0, 0)),
            pl.BlockSpec((support_len * order, cp), lambda i: (0, 0)),
        ],
        out_specs=pl.BlockSpec((n, support_len * cp), lambda i: (0, 0)),
        compiler_params=pltpu.CompilerParams(
            dimension_semantics=("arbitrary",)),
        cost_estimate=pl.CostEstimate(
            flops=flops, transcendentals=0, bytes_accessed=bytes_accessed),
    )(a_flat, x_pad, wl_stack, wr_stack, b_stack)

    outs = [x] + [out_slab[:, s * cp: s * cp + c_out] for s in range(support_len)]
    return jnp.concatenate(outs, axis=1)


def graph_sage_reference(x, edge_index_list, params):
    """Pure-JAX f32 reference (same semantics, HIGHEST-precision matmuls)."""
    hi = jax.lax.Precision.HIGHEST
    out = [x]
    n = x.shape[0]
    for i, ei in enumerate(edge_index_list):
        a = mean_agg_matrix(ei, n)
        h = x
        for (wl, wr, b) in params[i]:
            agg = jnp.dot(a, h, precision=hi)
            h = jnp.maximum(jnp.dot(agg, wl, precision=hi) + b
                            + jnp.dot(h, wr, precision=hi), 0.0)
        out.append(h)
    return jnp.concatenate(out, axis=1)


# --------------------------------- main ------------------------------------ #
if __name__ == "__main__":
    batch_size = 2
    num_nodes = 16
    N = batch_size * num_nodes          # 32 total nodes
    c_in, c_out = 8, 32
    support_len, order = 3, 2
    num_edges = 64

    key = jax.random.PRNGKey(0)
    key, kx = jax.random.split(key)
    x = jax.random.normal(kx, (N, c_in), jnp.float32)

    edge_index_list = []
    for _ in range(support_len):
        key, ke = jax.random.split(key)
        edge_index_list.append(
            jax.random.randint(ke, (2, num_edges), 0, N, dtype=jnp.int32)
        )

    key, kp = jax.random.split(key)
    params = init_params(kp, c_in, c_out, support_len, order)

    fwd = jax.jit(graph_sage_forward)
    out = jax.block_until_ready(fwd(x, edge_index_list, params))

    expected_shape = (N, c_in + support_len * c_out)
    assert out.shape == expected_shape, (out.shape, expected_shape)
    assert jnp.all(jnp.isfinite(out))

    ref = graph_sage_reference(x, edge_index_list, params)
    max_err = float(jnp.max(jnp.abs(out - ref)))
    assert max_err < 1e-2, f"max abs error vs f32 reference too large: {max_err}"

    print("KERNEL_OK")
</pallas_src>

<mosaic_0001>
module attributes {stable_mosaic.version = 11 : i64} {
  func.func @fused_sage_kernel(%arg0: i32, %arg1: memref<96x32xf32, #tpu.memory_space<vmem>>, %arg2: memref<32x128xf32, #tpu.memory_space<vmem>>, %arg3: memref<6x128x128xf32, #tpu.memory_space<vmem>>, %arg4: memref<6x128x128xf32, #tpu.memory_space<vmem>>, %arg5: memref<6x128xf32, #tpu.memory_space<vmem>>, %arg6: memref<32x384xf32, #tpu.memory_space<vmem>>) attributes {dimension_semantics = [#tpu.dimension_semantics<arbitrary>], iteration_bounds = array<i64: 1>, scalar_prefetch = 0 : i64, scratch_operands = 0 : i64, tpu.core_type = #tpu.core_type<tc>, window_params = [{pipeline_mode = #tpu.pipeline_mode<synchronous>, transform_indices = @transform_0, window_bounds = array<i64: 96, 32>}, {pipeline_mode = #tpu.pipeline_mode<synchronous>, transform_indices = @transform_1, window_bounds = array<i64: 32, 128>}, {pipeline_mode = #tpu.pipeline_mode<synchronous>, transform_indices = @transform_2, window_bounds = array<i64: 6, 128, 128>}, {pipeline_mode = #tpu.pipeline_mode<synchronous>, transform_indices = @transform_3, window_bounds = array<i64: 6, 128, 128>}, {pipeline_mode = #tpu.pipeline_mode<synchronous>, transform_indices = @transform_4, window_bounds = array<i64: 6, 128>}, {pipeline_mode = #tpu.pipeline_mode<synchronous>, transform_indices = @transform_5, window_bounds = array<i64: 32, 384>}]} {
    %c0 = arith.constant 0 : index
    %c0_0 = arith.constant 0 : index
    %0 = vector.load %arg2[%c0, %c0_0] : memref<32x128xf32, #tpu.memory_space<vmem>>, vector<32x128xf32>
    %c0_1 = arith.constant 0 : index
    %c0_2 = arith.constant 0 : index
    %1 = vector.load %arg1[%c0_1, %c0_2] : memref<96x32xf32, #tpu.memory_space<vmem>>, vector<96x32xf32>
    %cst = arith.constant dense<0.000000e+00> : vector<96x128xf32>
    %2 = tpu.matmul %1, %0, %cst {dimension_numbers = #tpu.dot_dimension_numbers<[1], [0], [0], [1], [0, 0, 1, 1], [], []>} : vector<96x32xf32>, vector<32x128xf32>, vector<96x128xf32> -> vector<96x128xf32>
    %3 = vector.extract_strided_slice %2 {offsets = [0, 0], sizes = [32, 128], strides = [1, 1]} : vector<96x128xf32> to vector<32x128xf32>
    %c0_3 = arith.constant 0 : index
    %c0_4 = arith.constant 0 : index
    %c0_5 = arith.constant 0 : index
    %4 = vector.load %arg3[%c0_3, %c0_4, %c0_5] : memref<6x128x128xf32, #tpu.memory_space<vmem>>, vector<1x128x128xf32>
    %5 = vector.shape_cast %4 : vector<1x128x128xf32> to vector<128x128xf32>
    %cst_6 = arith.constant dense<0.000000e+00> : vector<32x128xf32>
    %6 = tpu.matmul %3, %5, %cst_6 {dimension_numbers = #tpu.dot_dimension_numbers<[1], [0], [0], [1], [0, 0, 1, 1], [], []>} : vector<32x128xf32>, vector<128x128xf32>, vector<32x128xf32> -> vector<32x128xf32>
    %c0_7 = arith.constant 0 : index
    %c0_8 = arith.constant 0 : index
    %c0_9 = arith.constant 0 : index
    %7 = vector.load %arg4[%c0_7, %c0_8, %c0_9] : memref<6x128x128xf32, #tpu.memory_space<vmem>>, vector<1x128x128xf32>
    %8 = vector.shape_cast %7 : vector<1x128x128xf32> to vector<128x128xf32>
    %cst_10 = arith.constant dense<0.000000e+00> : vector<32x128xf32>
    %9 = tpu.matmul %0, %8, %cst_10 {dimension_numbers = #tpu.dot_dimension_numbers<[1], [0], [0], [1], [0, 0, 1, 1], [], []>} : vector<32x128xf32>, vector<128x128xf32>, vector<32x128xf32> -> vector<32x128xf32>
    %10 = arith.addf %6, %9 : vector<32x128xf32>
    %c0_11 = arith.constant 0 : index
    %c0_12 = arith.constant 0 : index
    %11 = vector.load %arg5[%c0_11, %c0_12] : memref<6x128xf32, #tpu.memory_space<vmem>>, vector<1x128xf32>
    %12 = vector.broadcast %11 : vector<1x128xf32> to vector<32x128xf32>
    %13 = arith.addf %10, %12 : vector<32x128xf32>
    %cst_13 = arith.constant 0.000000e+00 : f32
    %14 = vector.broadcast %cst_13 : f32 to vector<32x128xf32>
    %15 = arith.maximumf %13, %14 : vector<32x128xf32>
    %16 = vector.extract_strided_slice %2 {offsets = [32, 0], sizes = [32, 128], strides = [1, 1]} : vector<96x128xf32> to vector<32x128xf32>
    %c2 = arith.constant 2 : index
    %c0_14 = arith.constant 0 : index
    %c0_15 = arith.constant 0 : index
    %17 = vector.load %arg3[%c2, %c0_14, %c0_15] : memref<6x128x128xf32, #tpu.memory_space<vmem>>, vector<1x128x128xf32>
    %18 = vector.shape_cast %17 : vector<1x128x128xf32> to vector<128x128xf32>
    %cst_16 = arith.constant dense<0.000000e+00> : vector<32x128xf32>
    %19 = tpu.matmul %16, %18, %cst_16 {dimension_numbers = #tpu.dot_dimension_numbers<[1], [0], [0], [1], [0, 0, 1, 1], [], []>} : vector<32x128xf32>, vector<128x128xf32>, vector<32x128xf32> -> vector<32x128xf32>
    %c2_17 = arith.constant 2 : index
    %c0_18 = arith.constant 0 : index
    %c0_19 = arith.constant 0 : index
    %20 = vector.load %arg4[%c2_17, %c0_18, %c0_19] : memref<6x128x128xf32, #tpu.memory_space<vmem>>, vector<1x128x128xf32>
    %21 = vector.shape_cast %20 : vector<1x128x128xf32> to vector<128x128xf32>
    %cst_20 = arith.constant dense<0.000000e+00> : vector<32x128xf32>
    %22 = tpu.matmul %0, %21, %cst_20 {dimension_numbers = #tpu.dot_dimension_numbers<[1], [0], [0], [1], [0, 0, 1, 1], [], []>} : vector<32x128xf32>, vector<128x128xf32>, vector<32x128xf32> -> vector<32x128xf32>
    %23 = arith.addf %19, %22 : vector<32x128xf32>
    %c2_21 = arith.constant 2 : index
    %c0_22 = arith.constant 0 : index
    %24 = vector.load %arg5[%c2_21, %c0_22] : memref<6x128xf32, #tpu.memory_space<vmem>>, vector<1x128xf32>
    %25 = vector.broadcast %24 : vector<1x128xf32> to vector<32x128xf32>
    %26 = arith.addf %23, %25 : vector<32x128xf32>
    %cst_23 = arith.constant 0.000000e+00 : f32
    %27 = vector.broadcast %cst_23 : f32 to vector<32x128xf32>
    %28 = arith.maximumf %26, %27 : vector<32x128xf32>
    %29 = vector.extract_strided_slice %2 {offsets = [64, 0], sizes = [32, 128], strides = [1, 1]} : vector<96x128xf32> to vector<32x128xf32>
    %c4 = arith.constant 4 : index
    %c0_24 = arith.constant 0 : index
    %c0_25 = arith.constant 0 : index
    %30 = vector.load %arg3[%c4, %c0_24, %c0_25] : memref<6x128x128xf32, #tpu.memory_space<vmem>>, vector<1x128x128xf32>
    %31 = vector.shape_cast %30 : vector<1x128x128xf32> to vector<128x128xf32>
    %cst_26 = arith.constant dense<0.000000e+00> : vector<32x128xf32>
    %32 = tpu.matmul %29, %31, %cst_26 {dimension_numbers = #tpu.dot_dimension_numbers<[1], [0], [0], [1], [0, 0, 1, 1], [], []>} : vector<32x128xf32>, vector<128x128xf32>, vector<32x128xf32> -> vector<32x128xf32>
    %c4_27 = arith.constant 4 : index
    %c0_28 = arith.constant 0 : index
    %c0_29 = arith.constant 0 : index
    %33 = vector.load %arg4[%c4_27, %c0_28, %c0_29] : memref<6x128x128xf32, #tpu.memory_space<vmem>>, vector<1x128x128xf32>
    %34 = vector.shape_cast %33 : vector<1x128x128xf32> to vector<128x128xf32>
    %cst_30 = arith.constant dense<0.000000e+00> : vector<32x128xf32>
    %35 = tpu.matmul %0, %34, %cst_30 {dimension_numbers = #tpu.dot_dimension_numbers<[1], [0], [0], [1], [0, 0, 1, 1], [], []>} : vector<32x128xf32>, vector<128x128xf32>, vector<32x128xf32> -> vector<32x128xf32>
    %36 = arith.addf %32, %35 : vector<32x128xf32>
    %c4_31 = arith.constant 4 : index
    %c0_32 = arith.constant 0 : index
    %37 = vector.load %arg5[%c4_31, %c0_32] : memref<6x128xf32, #tpu.memory_space<vmem>>, vector<1x128xf32>
    %38 = vector.broadcast %37 : vector<1x128xf32> to vector<32x128xf32>
    %39 = arith.addf %36, %38 : vector<32x128xf32>
    %cst_33 = arith.constant 0.000000e+00 : f32
    %40 = vector.broadcast %cst_33 : f32 to vector<32x128xf32>
    %41 = arith.maximumf %39, %40 : vector<32x128xf32>
    %42 = vector.extract_strided_slice %1 {offsets = [0, 0], sizes = [32, 32], strides = [1, 1]} : vector<96x32xf32> to vector<32x32xf32>
    %cst_34 = arith.constant dense<0.000000e+00> : vector<32x128xf32>
    %43 = tpu.matmul %42, %15, %cst_34 {dimension_numbers = #tpu.dot_dimension_numbers<[1], [0], [0], [1], [0, 0, 1, 1], [], []>} : vector<32x32xf32>, vector<32x128xf32>, vector<32x128xf32> -> vector<32x128xf32>
    %c1 = arith.constant 1 : index
    %c0_35 = arith.constant 0 : index
    %c0_36 = arith.constant 0 : index
    %44 = vector.load %arg3[%c1, %c0_35, %c0_36] : memref<6x128x128xf32, #tpu.memory_space<vmem>>, vector<1x128x128xf32>
    %45 = vector.shape_cast %44 : vector<1x128x128xf32> to vector<128x128xf32>
    %cst_37 = arith.constant dense<0.000000e+00> : vector<32x128xf32>
    %46 = tpu.matmul %43, %45, %cst_37 {dimension_numbers = #tpu.dot_dimension_numbers<[1], [0], [0], [1], [0, 0, 1, 1], [], []>} : vector<32x128xf32>, vector<128x128xf32>, vector<32x128xf32> -> vector<32x128xf32>
    %c1_38 = arith.constant 1 : index
    %c0_39 = arith.constant 0 : index
    %c0_40 = arith.constant 0 : index
    %47 = vector.load %arg4[%c1_38, %c0_39, %c0_40] : memref<6x128x128xf32, #tpu.memory_space<vmem>>, vector<1x128x128xf32>
    %48 = vector.shape_cast %47 : vector<1x128x128xf32> to vector<128x128xf32>
    %cst_41 = arith.constant dense<0.000000e+00> : vector<32x128xf32>
    %49 = tpu.matmul %15, %48, %cst_41 {dimension_numbers = #tpu.dot_dimension_numbers<[1], [0], [0], [1], [0, 0, 1, 1], [], []>} : vector<32x128xf32>, vector<128x128xf32>, vector<32x128xf32> -> vector<32x128xf32>
    %50 = arith.addf %46, %49 : vector<32x128xf32>
    %c1_42 = arith.constant 1 : index
    %c0_43 = arith.constant 0 : index
    %51 = vector.load %arg5[%c1_42, %c0_43] : memref<6x128xf32, #tpu.memory_space<vmem>>, vector<1x128xf32>
    %52 = vector.broadcast %51 : vector<1x128xf32> to vector<32x128xf32>
    %53 = arith.addf %50, %52 : vector<32x128xf32>
    %cst_44 = arith.constant 0.000000e+00 : f32
    %54 = vector.broadcast %cst_44 : f32 to vector<32x128xf32>
    %55 = arith.maximumf %53, %54 : vector<32x128xf32>
    %56 = vector.extract_strided_slice %1 {offsets = [32, 0], sizes = [32, 32], strides = [1, 1]} : vector<96x32xf32> to vector<32x32xf32>
    %cst_45 = arith.constant dense<0.000000e+00> : vector<32x128xf32>
    %57 = tpu.matmul %56, %28, %cst_45 {dimension_numbers = #tpu.dot_dimension_numbers<[1], [0], [0], [1], [0, 0, 1, 1], [], []>} : vector<32x32xf32>, vector<32x128xf32>, vector<32x128xf32> -> vector<32x128xf32>
    %c3 = arith.constant 3 : index
    %c0_46 = arith.constant 0 : index
    %c0_47 = arith.constant 0 : index
    %58 = vector.load %arg3[%c3, %c0_46, %c0_47] : memref<6x128x128xf32, #tpu.memory_space<vmem>>, vector<1x128x128xf32>
    %59 = vector.shape_cast %58 : vector<1x128x128xf32> to vector<128x128xf32>
    %cst_48 = arith.constant dense<0.000000e+00> : vector<32x128xf32>
    %60 = tpu.matmul %57, %59, %cst_48 {dimension_numbers = #tpu.dot_dimension_numbers<[1], [0], [0], [1], [0, 0, 1, 1], [], []>} : vector<32x128xf32>, vector<128x128xf32>, vector<32x128xf32> -> vector<32x128xf32>
    %c3_49 = arith.constant 3 : index
    %c0_50 = arith.constant 0 : index
    %c0_51 = arith.constant 0 : index
    %61 = vector.load %arg4[%c3_49, %c0_50, %c0_51] : memref<6x128x128xf32, #tpu.memory_space<vmem>>, vector<1x128x128xf32>
    %62 = vector.shape_cast %61 : vector<1x128x128xf32> to vector<128x128xf32>
    %cst_52 = arith.constant dense<0.000000e+00> : vector<32x128xf32>
    %63 = tpu.matmul %28, %62, %cst_52 {dimension_numbers = #tpu.dot_dimension_numbers<[1], [0], [0], [1], [0, 0, 1, 1], [], []>} : vector<32x128xf32>, vector<128x128xf32>, vector<32x128xf32> -> vector<32x128xf32>
    %64 = arith.addf %60, %63 : vector<32x128xf32>
    %c3_53 = arith.constant 3 : index
    %c0_54 = arith.constant 0 : index
    %65 = vector.load %arg5[%c3_53, %c0_54] : memref<6x128xf32, #tpu.memory_space<vmem>>, vector<1x128xf32>
    %66 = vector.broadcast %65 : vector<1x128xf32> to vector<32x128xf32>
    %67 = arith.addf %64, %66 : vector<32x128xf32>
    %cst_55 = arith.constant 0.000000e+00 : f32
    %68 = vector.broadcast %cst_55 : f32 to vector<32x128xf32>
    %69 = arith.maximumf %67, %68 : vector<32x128xf32>
    %70 = vector.extract_strided_slice %1 {offsets = [64, 0], sizes = [32, 32], strides = [1, 1]} : vector<96x32xf32> to vector<32x32xf32>
    %cst_56 = arith.constant dense<0.000000e+00> : vector<32x128xf32>
    %71 = tpu.matmul %70, %41, %cst_56 {dimension_numbers = #tpu.dot_dimension_numbers<[1], [0], [0], [1], [0, 0, 1, 1], [], []>} : vector<32x32xf32>, vector<32x128xf32>, vector<32x128xf32> -> vector<32x128xf32>
    %c5 = arith.constant 5 : index
    %c0_57 = arith.constant 0 : index
    %c0_58 = arith.constant 0 : index
    %72 = vector.load %arg3[%c5, %c0_57, %c0_58] : memref<6x128x128xf32, #tpu.memory_space<vmem>>, vector<1x128x128xf32>
    %73 = vector.shape_cast %72 : vector<1x128x128xf32> to vector<128x128xf32>
    %cst_59 = arith.constant dense<0.000000e+00> : vector<32x128xf32>
    %74 = tpu.matmul %71, %73, %cst_59 {dimension_numbers = #tpu.dot_dimension_numbers<[1], [0], [0], [1], [0, 0, 1, 1], [], []>} : vector<32x128xf32>, vector<128x128xf32>, vector<32x128xf32> -> vector<32x128xf32>
    %c5_60 = arith.constant 5 : index
    %c0_61 = arith.constant 0 : index
    %c0_62 = arith.constant 0 : index
    %75 = vector.load %arg4[%c5_60, %c0_61, %c0_62] : memref<6x128x128xf32, #tpu.memory_space<vmem>>, vector<1x128x128xf32>
    %76 = vector.shape_cast %75 : vector<1x128x128xf32> to vector<128x128xf32>
    %cst_63 = arith.constant dense<0.000000e+00> : vector<32x128xf32>
    %77 = tpu.matmul %41, %76, %cst_63 {dimension_numbers = #tpu.dot_dimension_numbers<[1], [0], [0], [1], [0, 0, 1, 1], [], []>} : vector<32x128xf32>, vector<128x128xf32>, vector<32x128xf32> -> vector<32x128xf32>
    %78 = arith.addf %74, %77 : vector<32x128xf32>
    %c5_64 = arith.constant 5 : index
    %c0_65 = arith.constant 0 : index
    %79 = vector.load %arg5[%c5_64, %c0_65] : memref<6x128xf32, #tpu.memory_space<vmem>>, vector<1x128xf32>
    %80 = vector.broadcast %79 : vector<1x128xf32> to vector<32x128xf32>
    %81 = arith.addf %78, %80 : vector<32x128xf32>
    %cst_66 = arith.constant 0.000000e+00 : f32
    %82 = vector.broadcast %cst_66 : f32 to vector<32x128xf32>
    %83 = arith.maximumf %81, %82 : vector<32x128xf32>
    %c0_67 = arith.constant 0 : index
    %c0_68 = arith.constant 0 : index
    %84 = vector.load %arg6[%c0_67, %c0_68] : memref<32x384xf32, #tpu.memory_space<vmem>>, vector<32x128xf32>
    tpu.vector_store %arg6[%c0_67, %c0_68], %55 {strides = array<i32>} : memref<32x384xf32, #tpu.memory_space<vmem>>, vector<32x128xf32>,
    %c0_69 = arith.constant 0 : index
    %c128 = arith.constant 128 : index
    %85 = vector.load %arg6[%c0_69, %c128] : memref<32x384xf32, #tpu.memory_space<vmem>>, vector<32x128xf32>
    tpu.vector_store %arg6[%c0_69, %c128], %69 {strides = array<i32>} : memref<32x384xf32, #tpu.memory_space<vmem>>, vector<32x128xf32>,
    %c0_70 = arith.constant 0 : index
    %c256 = arith.constant 256 : index
    %86 = vector.load %arg6[%c0_70, %c256] : memref<32x384xf32, #tpu.memory_space<vmem>>, vector<32x128xf32>
    tpu.vector_store %arg6[%c0_70, %c256], %83 {strides = array<i32>} : memref<32x384xf32, #tpu.memory_space<vmem>>, vector<32x128xf32>,
    return
  }
  func.func @transform_0(%arg0: i32) -> (i32, i32) {
    %c0_i32 = arith.constant 0 : i32
    %c0_i32_0 = arith.constant 0 : i32
    %c0_i32_1 = arith.constant 0 : i32
    return %c0_i32, %c0_i32_0 : i32, i32
  }
  func.func @transform_1(%arg0: i32) -> (i32, i32) {
    %c0_i32 = arith.constant 0 : i32
    %c0_i32_0 = arith.constant 0 : i32
    %c0_i32_1 = arith.constant 0 : i32
    return %c0_i32, %c0_i32_0 : i32, i32
  }
  func.func @transform_2(%arg0: i32) -> (i32, i32, i32) {
    %c0_i32 = arith.constant 0 : i32
    %c0_i32_0 = arith.constant 0 : i32
    %c0_i32_1 = arith.constant 0 : i32
    %c0_i32_2 = arith.constant 0 : i32
    return %c0_i32, %c0_i32_0, %c0_i32_1 : i32, i32, i32
  }
  func.func @transform_3(%arg0: i32) -> (i32, i32, i32) {
    %c0_i32 = arith.constant 0 : i32
    %c0_i32_0 = arith.constant 0 : i32
    %c0_i32_1 = arith.constant 0 : i32
    %c0_i32_2 = arith.constant 0 : i32
    return %c0_i32, %c0_i32_0, %c0_i32_1 : i32, i32, i32
  }
  func.func @transform_4(%arg0: i32) -> (i32, i32) {
    %c0_i32 = arith.constant 0 : i32
    %c0_i32_0 = arith.constant 0 : i32
    %c0_i32_1 = arith.constant 0 : i32
    return %c0_i32, %c0_i32_0 : i32, i32
  }
  func.func @transform_5(%arg0: i32) -> (i32, i32) {
    %c0_i32 = arith.constant 0 : i32
    %c0_i32_0 = arith.constant 0 : i32
    %c0_i32_1 = arith.constant 0 : i32
    return %c0_i32, %c0_i32_0 : i32, i32
  }
}

</mosaic_0001>

<llo_original>
// kernel: graph_sage_forward.1
$region0: #{graph_sage_forward.1}
  #allocation0 [shape = 'u32[]', space=smem, size = 0x4, offset = 0x4, fixed_abs, tag = 'smem constant byte address 0x4 - core index']
  #allocation1 [shape = 'u32[72,128]{1,0:T(1,128)}', space=vmem, size = 0x9000, scoped, tag = 'internal scratch']
  %s0 = inlined_call_operand.vmem [shape: f32[96,32], index: 0, kind: input, shape index: {}]
  %s1 = inlined_call_operand.vmem [shape: f32[32,128], index: 1, kind: input, shape index: {}]
  %s2 = inlined_call_operand.vmem [shape: f32[6,128,128], index: 2, kind: input, shape index: {}]
  %s3 = inlined_call_operand.vmem [shape: f32[6,128,128], index: 3, kind: input, shape index: {}]
  %s4 = inlined_call_operand.vmem [shape: f32[6,128], index: 4, kind: input, shape index: {}]
  %s5 = inlined_call_operand.vmem [shape: f32[32,384], index: 5, kind: output, shape index: {}]
  %s6 = sld [smem:[#allocation0]]
  $region30: #{graph_sage_forward.1} parent=0
    _
  %s8 = ssub.s32 1, %s6
  %s9 = scalar_select 0, %s8, %s6
  // Predicated region
  $region2: #{graph_sage_forward.1} parent=0 // pred_check
    _
  $region3: #{graph_sage_forward.1} parent=0 // pred_check_branch
    %11 = sbr.rel (0) target = $region5
  $region4: #{graph_sage_forward.1} parent=0 // pred_region
    _
  $region5: #{graph_sage_forward.1} parent=0 // pred_fallthru
    _
  // Predicated region
  $region6: #{graph_sage_forward.1} parent=0 // pred_check
    _
  $region7: #{graph_sage_forward.1} parent=0 // pred_check_branch
    %13 = sbr.rel (0) target = $region9
  $region8: #{graph_sage_forward.1} parent=0 // pred_region
    _
  $region9: #{graph_sage_forward.1} parent=0 // pred_fallthru
    _
  // Predicated region
  $region10: #{graph_sage_forward.1} parent=0 // pred_check
    _
  $region11: #{graph_sage_forward.1} parent=0 // pred_check_branch
    %15 = sbr.rel (0) target = $region13
  $region12: #{graph_sage_forward.1} parent=0 // pred_region
    _
  $region13: #{graph_sage_forward.1} parent=0 // pred_fallthru
    _
  // Predicated region
  $region14: #{graph_sage_forward.1} parent=0 // pred_check
    _
  $region15: #{graph_sage_forward.1} parent=0 // pred_check_branch
    %17 = sbr.rel (0) target = $region17
  $region16: #{graph_sage_forward.1} parent=0 // pred_region
    _
  $region17: #{graph_sage_forward.1} parent=0 // pred_fallthru
    _
  // Predicated region
  $region18: #{graph_sage_forward.1} parent=0 // pred_check
    _
  $region19: #{graph_sage_forward.1} parent=0 // pred_check_branch
    %19 = sbr.rel (0) target = $region21
  $region20: #{graph_sage_forward.1} parent=0 // pred_region
    _
  $region21: #{graph_sage_forward.1} parent=0 // pred_fallthru
    _
  %v20 = vld [vmem:[%s1] sm:$0xff]
  %v21 = vld [vmem:[%s1 + $0x8] sm:$0xff]
  %v22 = vld [vmem:[%s1 + $0x10] sm:$0xff]
  %v23 = vld [vmem:[%s1 + $0x18] sm:$0xff]
  %v24 = vld [vmem:[%s0] sm:$0xff]
  %v25 = vld [vmem:[%s0 + $0x8] sm:$0xff]
  %v26 = vld [vmem:[%s0 + $0x10] sm:$0xff]
  %v27 = vld [vmem:[%s0 + $0x18] sm:$0xff]
  %v28 = vld [vmem:[%s0 + $0x20] sm:$0xff]
  %v29 = vld [vmem:[%s0 + $0x28] sm:$0xff]
  %v30 = vld [vmem:[%s0 + $0x30] sm:$0xff]
  %v31 = vld [vmem:[%s0 + $0x38] sm:$0xff]
  %v32 = vld [vmem:[%s0 + $0x40] sm:$0xff]
  %v33 = vld [vmem:[%s0 + $0x48] sm:$0xff]
  %v34 = vld [vmem:[%s0 + $0x50] sm:$0xff]
  %v35 = vld [vmem:[%s0 + $0x58] sm:$0xff]
  %vm36 = vcmask 261120
  %v38 = vsel %vm36, %v24, 0
  %v41 = vsel %vm36, %v25, 0
  %v44 = vsel %vm36, %v26, 0
  %v47 = vsel %vm36, %v27, 0
  %v50 = vsel %vm36, %v28, 0
  %v53 = vsel %vm36, %v29, 0
  %v56 = vsel %vm36, %v30, 0
  %v59 = vsel %vm36, %v31, 0
  %v62 = vsel %vm36, %v32, 0
  %v65 = vsel %vm36, %v33, 0
  %v68 = vsel %vm36, %v34, 0
  %v71 = vsel %vm36, %v35, 0
  %73 = vmatpush.msra.mxu0 0.0
  %74 = vmatpush.msra.mxu0 0.0
  %75 = vmatpush.msra.mxu0 0.0
  %76 = vmatpush.msra.mxu0 0.0
  %77 = vmatpush.msra.mxu0 0.0
  %78 = vmatpush.msra.mxu0 0.0
  %79 = vmatpush.msra.mxu0 0.0
  %80 = vmatpush.msra.mxu0 0.0
  %81 = vmatpush.msra.mxu0 0.0
  %82 = vmatpush.msra.mxu0 0.0
  %83 = vmatpush.msra.mxu0 0.0
  %84 = vmatpush.msra.mxu0 0.0
  %85 = vmatpush.msra.mxu0 %v23
  %86 = vmatpush.msra.mxu0 %v22
  %87 = vmatpush.msra.mxu0 %v21
  %88 = vmatpush.msra.mxu0 %v20
  %89 = vmatmul.f32.gmra.mxu0 %v38
  %v90 = vpop.f32.mrf.mxu0
  %v91 = vadd.f32 0.0, %v90
  %92 = vmatmul.f32.gmra.mxu0 %v41
  %v93 = vpop.f32.mrf.mxu0
  %v94 = vadd.f32 0.0, %v93
  %95 = vmatmul.f32.gmra.mxu0 %v44
  %v96 = vpop.f32.mrf.mxu0
  %v97 = vadd.f32 0.0, %v96
  %98 = vmatmul.f32.gmra.mxu0 %v47
  %v99 = vpop.f32.mrf.mxu0
  %v100 = vadd.f32 0.0, %v99
  %101 = vmatmul.f32.gmra.mxu0 %v50
  %v102 = vpop.f32.mrf.mxu0
  %v103 = vadd.f32 0.0, %v102
  %104 = vmatmul.f32.gmra.mxu0 %v53
  %v105 = vpop.f32.mrf.mxu0
  %v106 = vadd.f32 0.0, %v105
  %107 = vmatmul.f32.gmra.mxu0 %v56
  %v108 = vpop.f32.mrf.mxu0
  %v109 = vadd.f32 0.0, %v108
  %110 = vmatmul.f32.gmra.mxu0 %v59
  %v111 = vpop.f32.mrf.mxu0
  %v112 = vadd.f32 0.0, %v111
  %113 = vmatmul.f32.gmra.mxu0 %v62
  %v114 = vpop.f32.mrf.mxu0
  %v115 = vadd.f32 0.0, %v114
  %116 = vmatmul.f32.gmra.mxu0 %v65
  %v117 = vpop.f32.mrf.mxu0
  %v118 = vadd.f32 0.0, %v117
  %119 = vmatmul.f32.gmra.mxu0 %v68
  %v120 = vpop.f32.mrf.mxu0
  %v121 = vadd.f32 0.0, %v120
  %122 = vmatmul.f32.gmra.mxu0 %v71
  %v123 = vpop.f32.mrf.mxu0
  %v124 = vadd.f32 0.0, %v123
  %125 = vdwg.mxu0
  %v126 = vld [vmem:[%s2] sm:$0xff]
  %v127 = vld [vmem:[%s2 + $0x8] sm:$0xff]
  %v128 = vld [vmem:[%s2 + $0x10] sm:$0xff]
  %v129 = vld [vmem:[%s2 + $0x18] sm:$0xff]
  %v130 = vld [vmem:[%s2 + $0x20] sm:$0xff]
  %v131 = vld [vmem:[%s2 + $0x28] sm:$0xff]
  %v132 = vld [vmem:[%s2 + $0x30] sm:$0xff]
  %v133 = vld [vmem:[%s2 + $0x38] sm:$0xff]
  %v134 = vld [vmem:[%s2 + $0x40] sm:$0xff]
  %v135 = vld [vmem:[%s2 + $0x48] sm:$0xff]
  %v136 = vld [vmem:[%s2 + $0x50] sm:$0xff]
  %v137 = vld [vmem:[%s2 + $0x58] sm:$0xff]
  %v138 = vld [vmem:[%s2 + $0x60] sm:$0xff]
  %v139 = vld [vmem:[%s2 + $0x68] sm:$0xff]
  %v140 = vld [vmem:[%s2 + $0x70] sm:$0xff]
  %v141 = vld [vmem:[%s2 + $0x78] sm:$0xff]
  %v142 = vld [vmem:[%s3] sm:$0xff]
  %v143 = vld [vmem:[%s3 + $0x8] sm:$0xff]
  %v144 = vld [vmem:[%s3 + $0x10] sm:$0xff]
  %v145 = vld [vmem:[%s3 + $0x18] sm:$0xff]
  %v146 = vld [vmem:[%s3 + $0x20] sm:$0xff]
  %v147 = vld [vmem:[%s3 + $0x28] sm:$0xff]
  %v148 = vld [vmem:[%s3 + $0x30] sm:$0xff]
  %v149 = vld [vmem:[%s3 + $0x38] sm:$0xff]
  %v150 = vld [vmem:[%s3 + $0x40] sm:$0xff]
  %v151 = vld [vmem:[%s3 + $0x48] sm:$0xff]
  %v152 = vld [vmem:[%s3 + $0x50] sm:$0xff]
  %v153 = vld [vmem:[%s3 + $0x58] sm:$0xff]
  %v154 = vld [vmem:[%s3 + $0x60] sm:$0xff]
  %v155 = vld [vmem:[%s3 + $0x68] sm:$0xff]
  %v156 = vld [vmem:[%s3 + $0x70] sm:$0xff]
  %v157 = vld [vmem:[%s3 + $0x78] sm:$0xff]
  %158 = vmatpush.msra.mxu0 %v157
  %159 = vmatpush.msra.mxu0 %v156
  %160 = vmatpush.msra.mxu0 %v155
  %161 = vmatpush.msra.mxu0 %v154
  %162 = vmatpush.msra.mxu0 %v153
  %163 = vmatpush.msra.mxu0 %v152
  %164 = vmatpush.msra.mxu0 %v151
  %165 = vmatpush.msra.mxu0 %v150
  %166 = vmatpush.msra.mxu0 %v149
  %167 = vmatpush.msra.mxu0 %v148
  %168 = vmatpush.msra.mxu0 %v147
  %169 = vmatpush.msra.mxu0 %v146
  %170 = vmatpush.msra.mxu0 %v145
  %171 = vmatpush.msra.mxu0 %v144
  %172 = vmatpush.msra.mxu0 %v143
  %173 = vmatpush.msra.mxu0 %v142
  %174 = vmatmul.f32.gmra.mxu0 %v20
  %v175 = vpop.f32.mrf.mxu0
  %v176 = vadd.f32 0.0, %v175
  %177 = vmatmul.f32.gmra.mxu0 %v21
  %v178 = vpop.f32.mrf.mxu0
  %v179 = vadd.f32 0.0, %v178
  %180 = vmatmul.f32.gmra.mxu0 %v22
  %v181 = vpop.f32.mrf.mxu0
  %v182 = vadd.f32 0.0, %v181
  %183 = vmatmul.f32.gmra.mxu0 %v23
  %v184 = vpop.f32.mrf.mxu0
  %v185 = vadd.f32 0.0, %v184
  %186 = vdwg.mxu0
  %187 = vmatpush.msra.mxu0 %v141
  %188 = vmatpush.msra.mxu0 %v140
  %189 = vmatpush.msra.mxu0 %v139
  %190 = vmatpush.msra.mxu0 %v138
  %191 = vmatpush.msra.mxu0 %v137
  %192 = vmatpush.msra.mxu0 %v136
  %193 = vmatpush.msra.mxu0 %v135
  %194 = vmatpush.msra.mxu0 %v134
  %195 = vmatpush.msra.mxu0 %v133
  %196 = vmatpush.msra.mxu0 %v132
  %197 = vmatpush.msra.mxu0 %v131
  %198 = vmatpush.msra.mxu0 %v130
  %199 = vmatpush.msra.mxu0 %v129
  %200 = vmatpush.msra.mxu0 %v128
  %201 = vmatpush.msra.mxu0 %v127
  %202 = vmatpush.msra.mxu0 %v126
  %203 = vmatmul.f32.gmra.mxu0 %v91
  %v204 = vpop.f32.mrf.mxu0
  %v205 = vadd.f32 %v176, %v204
  %206 = vmatmul.f32.gmra.mxu0 %v94
  %v207 = vpop.f32.mrf.mxu0
  %v208 = vadd.f32 %v179, %v207
  %209 = vmatmul.f32.gmra.mxu0 %v97
  %v210 = vpop.f32.mrf.mxu0
  %v211 = vadd.f32 %v182, %v210
  %212 = vmatmul.f32.gmra.mxu0 %v100
  %v213 = vpop.f32.mrf.mxu0
  %v214 = vadd.f32 %v185, %v213
  %215 = vdwg.mxu0
  %v216 = vld [vmem:[%s4] sm:$0x1]
  %v217 = vperm.slane %v216, 0
  %v218 = vadd.f32 %v205, %v217
  %v219 = vadd.f32 %v208, %v217
  %v220 = vadd.f32 %v211, %v217
  %v221 = vadd.f32 %v214, %v217
  %v222 = vmax.f32 %v218, 0.0
  %v223 = vmax.f32 %v219, 0.0
  %v224 = vmax.f32 %v220, 0.0
  %v225 = vmax.f32 %v221, 0.0
  %s226 = scalar_lea.vmem %s2, 256
  %v227 = vld [vmem:[%s226] sm:$0xff]
  %v228 = vld [vmem:[%s226 + $0x8] sm:$0xff]
  %v229 = vld [vmem:[%s226 + $0x10] sm:$0xff]
  %v230 = vld [vmem:[%s226 + $0x18] sm:$0xff]
  %v231 = vld [vmem:[%s226 + $0x20] sm:$0xff]
  %v232 = vld [vmem:[%s226 + $0x28] sm:$0xff]
  %v233 = vld [vmem:[%s226 + $0x30] sm:$0xff]
  %v234 = vld [vmem:[%s226 + $0x38] sm:$0xff]
  %v235 = vld [vmem:[%s226 + $0x40] sm:$0xff]
  %v236 = vld [vmem:[%s226 + $0x48] sm:$0xff]
  %v237 = vld [vmem:[%s226 + $0x50] sm:$0xff]
  %v238 = vld [vmem:[%s226 + $0x58] sm:$0xff]
  %v239 = vld [vmem:[%s226 + $0x60] sm:$0xff]
  %v240 = vld [vmem:[%s226 + $0x68] sm:$0xff]
  %v241 = vld [vmem:[%s226 + $0x70] sm:$0xff]
  %v242 = vld [vmem:[%s226 + $0x78] sm:$0xff]
  %s243 = scalar_lea.vmem %s3, 256
  %v244 = vld [vmem:[%s243] sm:$0xff]
  %v245 = vld [vmem:[%s243 + $0x8] sm:$0xff]
  %v246 = vld [vmem:[%s243 + $0x10] sm:$0xff]
  %v247 = vld [vmem:[%s243 + $0x18] sm:$0xff]
  %v248 = vld [vmem:[%s243 + $0x20] sm:$0xff]
  %v249 = vld [vmem:[%s243 + $0x28] sm:$0xff]
  %v250 = vld [vmem:[%s243 + $0x30] sm:$0xff]
  %v251 = vld [vmem:[%s243 + $0x38] sm:$0xff]
  %v252 = vld [vmem:[%s243 + $0x40] sm:$0xff]
  %v253 = vld [vmem:[%s243 + $0x48] sm:$0xff]
  %v254 = vld [vmem:[%s243 + $0x50] sm:$0xff]
  %v255 = vld [vmem:[%s243 + $0x58] sm:$0xff]
  %v256 = vld [vmem:[%s243 + $0x60] sm:$0xff]
  %v257 = vld [vmem:[%s243 + $0x68] sm:$0xff]
  %v258 = vld [vmem:[%s243 + $0x70] sm:$0xff]
  %v259 = vld [vmem:[%s243 + $0x78] sm:$0xff]
  %260 = vmatpush.msra.mxu0 %v259
  %261 = vmatpush.msra.mxu0 %v258
  %262 = vmatpush.msra.mxu0 %v257
  %263 = vmatpush.msra.mxu0 %v256
  %264 = vmatpush.msra.mxu0 %v255
  %265 = vmatpush.msra.mxu0 %v254
  %266 = vmatpush.msra.mxu0 %v253
  %267 = vmatpush.msra.mxu0 %v252
  %268 = vmatpush.msra.mxu0 %v251
  %269 = vmatpush.msra.mxu0 %v250
  %270 = vmatpush.msra.mxu0 %v249
  %271 = vmatpush.msra.mxu0 %v248
  %272 = vmatpush.msra.mxu0 %v247
  %273 = vmatpush.msra.mxu0 %v246
  %274 = vmatpush.msra.mxu0 %v245
  %275 = vmatpush.msra.mxu0 %v244
  %276 = vmatmul.f32.gmra.mxu0 %v20
  %v277 = vpop.f32.mrf.mxu0
  %v278 = vadd.f32 0.0, %v277
  %279 = vmatmul.f32.gmra.mxu0 %v21
  %v280 = vpop.f32.mrf.mxu0
  %v281 = vadd.f32 0.0, %v280
  %282 = vmatmul.f32.gmra.mxu0 %v22
  %v283 = vpop.f32.mrf.mxu0
  %v284 = vadd.f32 0.0, %v283
  %285 = vmatmul.f32.gmra.mxu0 %v23
  %v286 = vpop.f32.mrf.mxu0
  %v287 = vadd.f32 0.0, %v286
  %288 = vdwg.mxu0
  %289 = vmatpush.msra.mxu0 %v242
  %290 = vmatpush.msra.mxu0 %v241
  %291 = vmatpush.msra.mxu0 %v240
  %292 = vmatpush.msra.mxu0 %v239
  %293 = vmatpush.msra.mxu0 %v238
  %294 = vmatpush.msra.mxu0 %v237
  %295 = vmatpush.msra.mxu0 %v236
  %296 = vmatpush.msra.mxu0 %v235
  %297 = vmatpush.msra.mxu0 %v234
  %298 = vmatpush.msra.mxu0 %v233
  %299 = vmatpush.msra.mxu0 %v232
  %300 = vmatpush.msra.mxu0 %v231
  %301 = vmatpush.msra.mxu0 %v230
  %302 = vmatpush.msra.mxu0 %v229
  %303 = vmatpush.msra.mxu0 %v228
  %304 = vmatpush.msra.mxu0 %v227
  %305 = vmatmul.f32.gmra.mxu0 %v103
  %v306 = vpop.f32.mrf.mxu0
  %v307 = vadd.f32 %v278, %v306
  %308 = vmatmul.f32.gmra.mxu0 %v106
  %v309 = vpop.f32.mrf.mxu0
  %v310 = vadd.f32 %v281, %v309
  %311 = vmatmul.f32.gmra.mxu0 %v109
  %v312 = vpop.f32.mrf.mxu0
  %v313 = vadd.f32 %v284, %v312
  %314 = vmatmul.f32.gmra.mxu0 %v112
  %v315 = vpop.f32.mrf.mxu0
  %v316 = vadd.f32 %v287, %v315
  %317 = vdwg.mxu0
  %v318 = vld [vmem:[%s4 + $0x2] sm:$0x1]
  %v319 = vperm.slane %v318, 0
  %v320 = vadd.f32 %v307, %v319
  %v321 = vadd.f32 %v310, %v319
  %v322 = vadd.f32 %v313, %v319
  %v323 = vadd.f32 %v316, %v319
  %v324 = vmax.f32 %v320, 0.0
  %v325 = vmax.f32 %v321, 0.0
  %v326 = vmax.f32 %v322, 0.0
  %v327 = vmax.f32 %v323, 0.0
  %s328 = scalar_lea.vmem %s2, 512
  %v329 = vld [vmem:[%s328] sm:$0xff]
  %v330 = vld [vmem:[%s328 + $0x8] sm:$0xff]
  %v331 = vld [vmem:[%s328 + $0x10] sm:$0xff]
  %v332 = vld [vmem:[%s328 + $0x18] sm:$0xff]
  %v333 = vld [vmem:[%s328 + $0x20] sm:$0xff]
  %v334 = vld [vmem:[%s328 + $0x28] sm:$0xff]
  %v335 = vld [vmem:[%s328 + $0x30] sm:$0xff]
  %v336 = vld [vmem:[%s328 + $0x38] sm:$0xff]
  %v337 = vld [vmem:[%s328 + $0x40] sm:$0xff]
  %v338 = vld [vmem:[%s328 + $0x48] sm:$0xff]
  %v339 = vld [vmem:[%s328 + $0x50] sm:$0xff]
  %v340 = vld [vmem:[%s328 + $0x58] sm:$0xff]
  %v341 = vld [vmem:[%s328 + $0x60] sm:$0xff]
  %v342 = vld [vmem:[%s328 + $0x68] sm:$0xff]
  %v343 = vld [vmem:[%s328 + $0x70] sm:$0xff]
  %v344 = vld [vmem:[%s328 + $0x78] sm:$0xff]
  %s345 = scalar_lea.vmem %s3, 512
  %v346 = vld [vmem:[%s345] sm:$0xff]
  %v347 = vld [vmem:[%s345 + $0x8] sm:$0xff]
  %v348 = vld [vmem:[%s345 + $0x10] sm:$0xff]
  %v349 = vld [vmem:[%s345 + $0x18] sm:$0xff]
  %v350 = vld [vmem:[%s345 + $0x20] sm:$0xff]
  %v351 = vld [vmem:[%s345 + $0x28] sm:$0xff]
  %v352 = vld [vmem:[%s345 + $0x30] sm:$0xff]
  %v353 = vld [vmem:[%s345 + $0x38] sm:$0xff]
  %v354 = vld [vmem:[%s345 + $0x40] sm:$0xff]
  %v355 = vld [vmem:[%s345 + $0x48] sm:$0xff]
  %v356 = vld [vmem:[%s345 + $0x50] sm:$0xff]
  %v357 = vld [vmem:[%s345 + $0x58] sm:$0xff]
  %v358 = vld [vmem:[%s345 + $0x60] sm:$0xff]
  %v359 = vld [vmem:[%s345 + $0x68] sm:$0xff]
  %v360 = vld [vmem:[%s345 + $0x70] sm:$0xff]
  %v361 = vld [vmem:[%s345 + $0x78] sm:$0xff]
  %362 = vmatpush.msra.mxu0 %v361
  %363 = vmatpush.msra.mxu0 %v360
  %364 = vmatpush.msra.mxu0 %v359
  %365 = vmatpush.msra.mxu0 %v358
  %366 = vmatpush.msra.mxu0 %v357
  %367 = vmatpush.msra.mxu0 %v356
  %368 = vmatpush.msra.mxu0 %v355
  %369 = vmatpush.msra.mxu0 %v354
  %370 = vmatpush.msra.mxu0 %v353
  %371 = vmatpush.msra.mxu0 %v352
  %372 = vmatpush.msra.mxu0 %v351
  %373 = vmatpush.msra.mxu0 %v350
  %374 = vmatpush.msra.mxu0 %v349
  %375 = vmatpush.msra.mxu0 %v348
  %376 = vmatpush.msra.mxu0 %v347
  %377 = vmatpush.msra.mxu0 %v346
  %378 = vmatmul.f32.gmra.mxu0 %v20
  %v379 = vpop.f32.mrf.mxu0
  %v380 = vadd.f32 0.0, %v379
  %381 = vmatmul.f32.gmra.mxu0 %v21
  %v382 = vpop.f32.mrf.mxu0
  %v383 = vadd.f32 0.0, %v382
  %384 = vmatmul.f32.gmra.mxu0 %v22
  %v385 = vpop.f32.mrf.mxu0
  %v386 = vadd.f32 0.0, %v385
  %387 = vmatmul.f32.gmra.mxu0 %v23
  %v388 = vpop.f32.mrf.mxu0
  %v389 = vadd.f32 0.0, %v388
  %390 = vdwg.mxu0
  %391 = vmatpush.msra.mxu0 %v344
  %392 = vmatpush.msra.mxu0 %v343
  %393 = vmatpush.msra.mxu0 %v342
  %394 = vmatpush.msra.mxu0 %v341
  %395 = vmatpush.msra.mxu0 %v340
  %396 = vmatpush.msra.mxu0 %v339
  %397 = vmatpush.msra.mxu0 %v338
  %398 = vmatpush.msra.mxu0 %v337
  %399 = vmatpush.msra.mxu0 %v336
  %400 = vmatpush.msra.mxu0 %v335
  %401 = vmatpush.msra.mxu0 %v334
  %402 = vmatpush.msra.mxu0 %v333
  %403 = vmatpush.msra.mxu0 %v332
  %404 = vmatpush.msra.mxu0 %v331
  %405 = vmatpush.msra.mxu0 %v330
  %406 = vmatpush.msra.mxu0 %v329
  %407 = vmatmul.f32.gmra.mxu0 %v115
  %v408 = vpop.f32.mrf.mxu0
  %v409 = vadd.f32 %v380, %v408
  %410 = vmatmul.f32.gmra.mxu0 %v118
  %v411 = vpop.f32.mrf.mxu0
  %v412 = vadd.f32 %v383, %v411
  %413 = vmatmul.f32.gmra.mxu0 %v121
  %v414 = vpop.f32.mrf.mxu0
  %v415 = vadd.f32 %v386, %v414
  %416 = vmatmul.f32.gmra.mxu0 %v124
  %v417 = vpop.f32.mrf.mxu0
  %v418 = vadd.f32 %v389, %v417
  %419 = vdwg.mxu0
  %v420 = vld [vmem:[%s4 + $0x4] sm:$0x1]
  %v421 = vperm.slane %v420, 0
  %v422 = vadd.f32 %v409, %v421
  %v423 = vadd.f32 %v412, %v421
  %v424 = vadd.f32 %v415, %v421
  %v425 = vadd.f32 %v418, %v421
  %v426 = vmax.f32 %v422, 0.0
  %v427 = vmax.f32 %v423, 0.0
  %v428 = vmax.f32 %v424, 0.0
  %v429 = vmax.f32 %v425, 0.0
  %430 = vmatpush.msra.mxu0 0.0
  %431 = vmatpush.msra.mxu0 0.0
  %432 = vmatpush.msra.mxu0 0.0
  %433 = vmatpush.msra.mxu0 0.0
  %434 = vmatpush.msra.mxu0 0.0
  %435 = vmatpush.msra.mxu0 0.0
  %436 = vmatpush.msra.mxu0 0.0
  %437 = vmatpush.msra.mxu0 0.0
  %438 = vmatpush.msra.mxu0 0.0
  %439 = vmatpush.msra.mxu0 0.0
  %440 = vmatpush.msra.mxu0 0.0
  %441 = vmatpush.msra.mxu0 0.0
  %442 = vmatpush.msra.mxu0 %v225
  %443 = vmatpush.msra.mxu0 %v224
  %444 = vmatpush.msra.mxu0 %v223
  %445 = vmatpush.msra.mxu0 %v222
  %446 = vmatmul.f32.gmra.mxu0 %v38
  %v447 = vpop.f32.mrf.mxu0
  %v448 = vadd.f32 0.0, %v447
  %449 = vmatmul.f32.gmra.mxu0 %v41
  %v450 = vpop.f32.mrf.mxu0
  %v451 = vadd.f32 0.0, %v450
  %452 = vmatmul.f32.gmra.mxu0 %v44
  %v453 = vpop.f32.mrf.mxu0
  %v454 = vadd.f32 0.0, %v453
  %455 = vmatmul.f32.gmra.mxu0 %v47
  %v456 = vpop.f32.mrf.mxu0
  %v457 = vadd.f32 0.0, %v456
  %458 = vdwg.mxu0
  %s459 = scalar_lea.vmem %s2, 128
  %v460 = vld [vmem:[%s459] sm:$0xff]
  %v461 = vld [vmem:[%s459 + $0x8] sm:$0xff]
  %v462 = vld [vmem:[%s459 + $0x10] sm:$0xff]
  %v463 = vld [vmem:[%s459 + $0x18] sm:$0xff]
  %v464 = vld [vmem:[%s459 + $0x20] sm:$0xff]
  %v465 = vld [vmem:[%s459 + $0x28] sm:$0xff]
  %v466 = vld [vmem:[%s459 + $0x30] sm:$0xff]
  %v467 = vld [vmem:[%s459 + $0x38] sm:$0xff]
  %v468 = vld [vmem:[%s459 + $0x40] sm:$0xff]
  %v469 = vld [vmem:[%s459 + $0x48] sm:$0xff]
  %v470 = vld [vmem:[%s459 + $0x50] sm:$0xff]
  %v471 = vld [vmem:[%s459 + $0x58] sm:$0xff]
  %v472 = vld [vmem:[%s459 + $0x60] sm:$0xff]
  %v473 = vld [vmem:[%s459 + $0x68] sm:$0xff]
  %v474 = vld [vmem:[%s459 + $0x70] sm:$0xff]
  %v475 = vld [vmem:[%s459 + $0x78] sm:$0xff]
  %s476 = scalar_lea.vmem %s3, 128
  %v477 = vld [vmem:[%s476] sm:$0xff]
  %v478 = vld [vmem:[%s476 + $0x8] sm:$0xff]
  %v479 = vld [vmem:[%s476 + $0x10] sm:$0xff]
  %v480 = vld [vmem:[%s476 + $0x18] sm:$0xff]
  %v481 = vld [vmem:[%s476 + $0x20] sm:$0xff]
  %v482 = vld [vmem:[%s476 + $0x28] sm:$0xff]
  %v483 = vld [vmem:[%s476 + $0x30] sm:$0xff]
  %v484 = vld [vmem:[%s476 + $0x38] sm:$0xff]
  %v485 = vld [vmem:[%s476 + $0x40] sm:$0xff]
  %v486 = vld [vmem:[%s476 + $0x48] sm:$0xff]
  %v487 = vld [vmem:[%s476 + $0x50] sm:$0xff]
  %v488 = vld [vmem:[%s476 + $0x58] sm:$0xff]
  %v489 = vld [vmem:[%s476 + $0x60] sm:$0xff]
  %v490 = vld [vmem:[%s476 + $0x68] sm:$0xff]
  %v491 = vld [vmem:[%s476 + $0x70] sm:$0xff]
  %v492 = vld [vmem:[%s476 + $0x78] sm:$0xff]
  %493 = vmatpush.msra.mxu0 %v492
  %494 = vmatpush.msra.mxu0 %v491
  %495 = vmatpush.msra.mxu0 %v490
  %496 = vmatpush.msra.mxu0 %v489
  %497 = vmatpush.msra.mxu0 %v488
  %498 = vmatpush.msra.mxu0 %v487
  %499 = vmatpush.msra.mxu0 %v486
  %500 = vmatpush.msra.mxu0 %v485
  %501 = vmatpush.msra.mxu0 %v484
  %502 = vmatpush.msra.mxu0 %v483
  %503 = vmatpush.msra.mxu0 %v482
  %504 = vmatpush.msra.mxu0 %v481
  %505 = vmatpush.msra.mxu0 %v480
  %506 = vmatpush.msra.mxu0 %v479
  %507 = vmatpush.msra.mxu0 %v478
  %508 = vmatpush.msra.mxu0 %v477
  %509 = vmatmul.f32.gmra.mxu0 %v222
  %v510 = vpop.f32.mrf.mxu0
  %v511 = vadd.f32 0.0, %v510
  %512 = vmatmul.f32.gmra.mxu0 %v223
  %v513 = vpop.f32.mrf.mxu0
  %v514 = vadd.f32 0.0, %v513
  %515 = vmatmul.f32.gmra.mxu0 %v224
  %v516 = vpop.f32.mrf.mxu0
  %v517 = vadd.f32 0.0, %v516
  %518 = vmatmul.f32.gmra.mxu0 %v225
  %v519 = vpop.f32.mrf.mxu0
  %v520 = vadd.f32 0.0, %v519
  %521 = vdwg.mxu0
  %522 = vmatpush.msra.mxu0 %v475
  %523 = vmatpush.msra.mxu0 %v474
  %524 = vmatpush.msra.mxu0 %v473
  %525 = vmatpush.msra.mxu0 %v472
  %526 = vmatpush.msra.mxu0 %v471
  %527 = vmatpush.msra.mxu0 %v470
  %528 = vmatpush.msra.mxu0 %v469
  %529 = vmatpush.msra.mxu0 %v468
  %530 = vmatpush.msra.mxu0 %v467
  %531 = vmatpush.msra.mxu0 %v466
  %532 = vmatpush.msra.mxu0 %v465
  %533 = vmatpush.msra.mxu0 %v464
  %534 = vmatpush.msra.mxu0 %v463
  %535 = vmatpush.msra.mxu0 %v462
  %536 = vmatpush.msra.mxu0 %v461
  %537 = vmatpush.msra.mxu0 %v460
  %538 = vmatmul.f32.gmra.mxu0 %v448
  %v539 = vpop.f32.mrf.mxu0
  %v540 = vadd.f32 %v511, %v539
  %541 = vmatmul.f32.gmra.mxu0 %v451
  %v542 = vpop.f32.mrf.mxu0
  %v543 = vadd.f32 %v514, %v542
  %544 = vmatmul.f32.gmra.mxu0 %v454
  %v545 = vpop.f32.mrf.mxu0
  %v546 = vadd.f32 %v517, %v545
  %547 = vmatmul.f32.gmra.mxu0 %v457
  %v548 = vpop.f32.mrf.mxu0
  %v549 = vadd.f32 %v520, %v548
  %550 = vdwg.mxu0
  %v551 = vld [vmem:[%s4 + $0x1] sm:$0x1]
  %v552 = vperm.slane %v551, 0
  %v553 = vadd.f32 %v540, %v552
  %v554 = vadd.f32 %v543, %v552
  %v555 = vadd.f32 %v546, %v552
  %v556 = vadd.f32 %v549, %v552
  %v557 = vmax.f32 %v553, 0.0
  %v558 = vmax.f32 %v554, 0.0
  %v559 = vmax.f32 %v555, 0.0
  %v560 = vmax.f32 %v556, 0.0
  %561 = vmatpush.msra.mxu0 0.0
  %562 = vmatpush.msra.mxu0 0.0
  %563 = vmatpush.msra.mxu0 0.0
  %564 = vmatpush.msra.mxu0 0.0
  %565 = vmatpush.msra.mxu0 0.0
  %566 = vmatpush.msra.mxu0 0.0
  %567 = vmatpush.msra.mxu0 0.0
  %568 = vmatpush.msra.mxu0 0.0
  %569 = vmatpush.msra.mxu0 0.0
  %570 = vmatpush.msra.mxu0 0.0
  %571 = vmatpush.msra.mxu0 0.0
  %572 = vmatpush.msra.mxu0 0.0
  %573 = vmatpush.msra.mxu0 %v327
  %574 = vmatpush.msra.mxu0 %v326
  %575 = vmatpush.msra.mxu0 %v325
  %576 = vmatpush.msra.mxu0 %v324
  %577 = vmatmul.f32.gmra.mxu0 %v50
  %v578 = vpop.f32.mrf.mxu0
  %v579 = vadd.f32 0.0, %v578
  %580 = vmatmul.f32.gmra.mxu0 %v53
  %v581 = vpop.f32.mrf.mxu0
  %v582 = vadd.f32 0.0, %v581
  %583 = vmatmul.f32.gmra.mxu0 %v56
  %v584 = vpop.f32.mrf.mxu0
  %v585 = vadd.f32 0.0, %v584
  %586 = vmatmul.f32.gmra.mxu0 %v59
  %v587 = vpop.f32.mrf.mxu0
  %v588 = vadd.f32 0.0, %v587
  %589 = vdwg.mxu0
  %s590 = scalar_lea.vmem %s2, 384
  %v591 = vld [vmem:[%s590] sm:$0xff]
  %v592 = vld [vmem:[%s590 + $0x8] sm:$0xff]
  %v593 = vld [vmem:[%s590 + $0x10] sm:$0xff]
  %v594 = vld [vmem:[%s590 + $0x18] sm:$0xff]
  %v595 = vld [vmem:[%s590 + $0x20] sm:$0xff]
  %v596 = vld [vmem:[%s590 + $0x28] sm:$0xff]
  %v597 = vld [vmem:[%s590 + $0x30] sm:$0xff]
  %v598 = vld [vmem:[%s590 + $0x38] sm:$0xff]
  %v599 = vld [vmem:[%s590 + $0x40] sm:$0xff]
  %v600 = vld [vmem:[%s590 + $0x48] sm:$0xff]
  %v601 = vld [vmem:[%s590 + $0x50] sm:$0xff]
  %v602 = vld [vmem:[%s590 + $0x58] sm:$0xff]
  %v603 = vld [vmem:[%s590 + $0x60] sm:$0xff]
  %v604 = vld [vmem:[%s590 + $0x68] sm:$0xff]
  %v605 = vld [vmem:[%s590 + $0x70] sm:$0xff]
  %v606 = vld [vmem:[%s590 + $0x78] sm:$0xff]
  %s607 = scalar_lea.vmem %s3, 384
  %v608 = vld [vmem:[%s607] sm:$0xff]
  %v609 = vld [vmem:[%s607 + $0x8] sm:$0xff]
  %v610 = vld [vmem:[%s607 + $0x10] sm:$0xff]
  %v611 = vld [vmem:[%s607 + $0x18] sm:$0xff]
  %v612 = vld [vmem:[%s607 + $0x20] sm:$0xff]
  %v613 = vld [vmem:[%s607 + $0x28] sm:$0xff]
  %v614 = vld [vmem:[%s607 + $0x30] sm:$0xff]
  %v615 = vld [vmem:[%s607 + $0x38] sm:$0xff]
  %v616 = vld [vmem:[%s607 + $0x40] sm:$0xff]
  %v617 = vld [vmem:[%s607 + $0x48] sm:$0xff]
  %v618 = vld [vmem:[%s607 + $0x50] sm:$0xff]
  %v619 = vld [vmem:[%s607 + $0x58] sm:$0xff]
  %v620 = vld [vmem:[%s607 + $0x60] sm:$0xff]
  %v621 = vld [vmem:[%s607 + $0x68] sm:$0xff]
  %v622 = vld [vmem:[%s607 + $0x70] sm:$0xff]
  %v623 = vld [vmem:[%s607 + $0x78] sm:$0xff]
  %624 = vmatpush.msra.mxu0 %v623
  %625 = vmatpush.msra.mxu0 %v622
  %626 = vmatpush.msra.mxu0 %v621
  %627 = vmatpush.msra.mxu0 %v620
  %628 = vmatpush.msra.mxu0 %v619
  %629 = vmatpush.msra.mxu0 %v618
  %630 = vmatpush.msra.mxu0 %v617
  %631 = vmatpush.msra.mxu0 %v616
  %632 = vmatpush.msra.mxu0 %v615
  %633 = vmatpush.msra.mxu0 %v614
  %634 = vmatpush.msra.mxu0 %v613
  %635 = vmatpush.msra.mxu0 %v612
  %636 = vmatpush.msra.mxu0 %v611
  %637 = vmatpush.msra.mxu0 %v610
  %638 = vmatpush.msra.mxu0 %v609
  %639 = vmatpush.msra.mxu0 %v608
  %640 = vmatmul.f32.gmra.mxu0 %v324
  %v641 = vpop.f32.mrf.mxu0
  %v642 = vadd.f32 0.0, %v641
  %643 = vmatmul.f32.gmra.mxu0 %v325
  %v644 = vpop.f32.mrf.mxu0
  %v645 = vadd.f32 0.0, %v644
  %646 = vmatmul.f32.gmra.mxu0 %v326
  %v647 = vpop.f32.mrf.mxu0
  %v648 = vadd.f32 0.0, %v647
  %649 = vmatmul.f32.gmra.mxu0 %v327
  %v650 = vpop.f32.mrf.mxu0
  %v651 = vadd.f32 0.0, %v650
  %652 = vdwg.mxu0
  %653 = vmatpush.msra.mxu0 %v606
  %654 = vmatpush.msra.mxu0 %v605
  %655 = vmatpush.msra.mxu0 %v604
  %656 = vmatpush.msra.mxu0 %v603
  %657 = vmatpush.msra.mxu0 %v602
  %658 = vmatpush.msra.mxu0 %v601
  %659 = vmatpush.msra.mxu0 %v600
  %660 = vmatpush.msra.mxu0 %v599
  %661 = vmatpush.msra.mxu0 %v598
  %662 = vmatpush.msra.mxu0 %v597
  %663 = vmatpush.msra.mxu0 %v596
  %664 = vmatpush.msra.mxu0 %v595
  %665 = vmatpush.msra.mxu0 %v594
  %666 = vmatpush.msra.mxu0 %v593
  %667 = vmatpush.msra.mxu0 %v592
  %668 = vmatpush.msra.mxu0 %v591
  %669 = vmatmul.f32.gmra.mxu0 %v579
  %v670 = vpop.f32.mrf.mxu0
  %v671 = vadd.f32 %v642, %v670
  %672 = vmatmul.f32.gmra.mxu0 %v582
  %v673 = vpop.f32.mrf.mxu0
  %v674 = vadd.f32 %v645, %v673
  %675 = vmatmul.f32.gmra.mxu0 %v585
  %v676 = vpop.f32.mrf.mxu0
  %v677 = vadd.f32 %v648, %v676
  %678 = vmatmul.f32.gmra.mxu0 %v588
  %v679 = vpop.f32.mrf.mxu0
  %v680 = vadd.f32 %v651, %v679
  %681 = vdwg.mxu0
  %v682 = vld [vmem:[%s4 + $0x3] sm:$0x1]
  %v683 = vperm.slane %v682, 0
  %v684 = vadd.f32 %v671, %v683
  %v685 = vadd.f32 %v674, %v683
  %v686 = vadd.f32 %v677, %v683
  %v687 = vadd.f32 %v680, %v683
  %v688 = vmax.f32 %v684, 0.0
  %v689 = vmax.f32 %v685, 0.0
  %v690 = vmax.f32 %v686, 0.0
  %v691 = vmax.f32 %v687, 0.0
  %692 = vmatpush.msra.mxu0 0.0
  %693 = vmatpush.msra.mxu0 0.0
  %694 = vmatpush.msra.mxu0 0.0
  %695 = vmatpush.msra.mxu0 0.0
  %696 = vmatpush.msra.mxu0 0.0
  %697 = vmatpush.msra.mxu0 0.0
  %698 = vmatpush.msra.mxu0 0.0
  %699 = vmatpush.msra.mxu0 0.0
  %700 = vmatpush.msra.mxu0 0.0
  %701 = vmatpush.msra.mxu0 0.0
  %702 = vmatpush.msra.mxu0 0.0
  %703 = vmatpush.msra.mxu0 0.0
  %704 = vmatpush.msra.mxu0 %v429
  %705 = vmatpush.msra.mxu0 %v428
  %706 = vmatpush.msra.mxu0 %v427
  %707 = vmatpush.msra.mxu0 %v426
  %708 = vmatmul.f32.gmra.mxu0 %v62
  %v709 = vpop.f32.mrf.mxu0
  %v710 = vadd.f32 0.0, %v709
  %711 = vmatmul.f32.gmra.mxu0 %v65
  %v712 = vpop.f32.mrf.mxu0
  %v713 = vadd.f32 0.0, %v712
  %714 = vmatmul.f32.gmra.mxu0 %v68
  %v715 = vpop.f32.mrf.mxu0
  %v716 = vadd.f32 0.0, %v715
  %717 = vmatmul.f32.gmra.mxu0 %v71
  %v718 = vpop.f32.mrf.mxu0
  %v719 = vadd.f32 0.0, %v718
  %720 = vdwg.mxu0
  %s721 = scalar_lea.vmem %s2, 640
  %v722 = vld [vmem:[%s721] sm:$0xff]
  %v723 = vld [vmem:[%s721 + $0x8] sm:$0xff]
  %v724 = vld [vmem:[%s721 + $0x10] sm:$0xff]
  %v725 = vld [vmem:[%s721 + $0x18] sm:$0xff]
  %v726 = vld [vmem:[%s721 + $0x20] sm:$0xff]
  %v727 = vld [vmem:[%s721 + $0x28] sm:$0xff]
  %v728 = vld [vmem:[%s721 + $0x30] sm:$0xff]
  %v729 = vld [vmem:[%s721 + $0x38] sm:$0xff]
  %v730 = vld [vmem:[%s721 + $0x40] sm:$0xff]
  %v731 = vld [vmem:[%s721 + $0x48] sm:$0xff]
  %v732 = vld [vmem:[%s721 + $0x50] sm:$0xff]
  %v733 = vld [vmem:[%s721 + $0x58] sm:$0xff]
  %v734 = vld [vmem:[%s721 + $0x60] sm:$0xff]
  %v735 = vld [vmem:[%s721 + $0x68] sm:$0xff]
  %v736 = vld [vmem:[%s721 + $0x70] sm:$0xff]
  %v737 = vld [vmem:[%s721 + $0x78] sm:$0xff]
  %s738 = scalar_lea.vmem %s3, 640
  %v739 = vld [vmem:[%s738] sm:$0xff]
  %v740 = vld [vmem:[%s738 + $0x8] sm:$0xff]
  %v741 = vld [vmem:[%s738 + $0x10] sm:$0xff]
  %v742 = vld [vmem:[%s738 + $0x18] sm:$0xff]
  %v743 = vld [vmem:[%s738 + $0x20] sm:$0xff]
  %v744 = vld [vmem:[%s738 + $0x28] sm:$0xff]
  %v745 = vld [vmem:[%s738 + $0x30] sm:$0xff]
  %v746 = vld [vmem:[%s738 + $0x38] sm:$0xff]
  %v747 = vld [vmem:[%s738 + $0x40] sm:$0xff]
  %v748 = vld [vmem:[%s738 + $0x48] sm:$0xff]
  %v749 = vld [vmem:[%s738 + $0x50] sm:$0xff]
  %v750 = vld [vmem:[%s738 + $0x58] sm:$0xff]
  %v751 = vld [vmem:[%s738 + $0x60] sm:$0xff]
  %v752 = vld [vmem:[%s738 + $0x68] sm:$0xff]
  %v753 = vld [vmem:[%s738 + $0x70] sm:$0xff]
  %v754 = vld [vmem:[%s738 + $0x78] sm:$0xff]
  %755 = vmatpush.msra.mxu0 %v754
  %756 = vmatpush.msra.mxu0 %v753
  %757 = vmatpush.msra.mxu0 %v752
  %758 = vmatpush.msra.mxu0 %v751
  %759 = vmatpush.msra.mxu0 %v750
  %760 = vmatpush.msra.mxu0 %v749
  %761 = vmatpush.msra.mxu0 %v748
  %762 = vmatpush.msra.mxu0 %v747
  %763 = vmatpush.msra.mxu0 %v746
  %764 = vmatpush.msra.mxu0 %v745
  %765 = vmatpush.msra.mxu0 %v744
  %766 = vmatpush.msra.mxu0 %v743
  %767 = vmatpush.msra.mxu0 %v742
  %768 = vmatpush.msra.mxu0 %v741
  %769 = vmatpush.msra.mxu0 %v740
  %770 = vmatpush.msra.mxu0 %v739
  %771 = vmatmul.f32.gmra.mxu0 %v426
  %v772 = vpop.f32.mrf.mxu0
  %v773 = vadd.f32 0.0, %v772
  %774 = vmatmul.f32.gmra.mxu0 %v427
  %v775 = vpop.f32.mrf.mxu0
  %v776 = vadd.f32 0.0, %v775
  %777 = vmatmul.f32.gmra.mxu0 %v428
  %v778 = vpop.f32.mrf.mxu0
  %v779 = vadd.f32 0.0, %v778
  %780 = vmatmul.f32.gmra.mxu0 %v429
  %v781 = vpop.f32.mrf.mxu0
  %v782 = vadd.f32 0.0, %v781
  %783 = vdwg.mxu0
  %784 = vmatpush.msra.mxu0 %v737
  %785 = vmatpush.msra.mxu0 %v736
  %786 = vmatpush.msra.mxu0 %v735
  %787 = vmatpush.msra.mxu0 %v734
  %788 = vmatpush.msra.mxu0 %v733
  %789 = vmatpush.msra.mxu0 %v732
  %790 = vmatpush.msra.mxu0 %v731
  %791 = vmatpush.msra.mxu0 %v730
  %792 = vmatpush.msra.mxu0 %v729
  %793 = vmatpush.msra.mxu0 %v728
  %794 = vmatpush.msra.mxu0 %v727
  %795 = vmatpush.msra.mxu0 %v726
  %796 = vmatpush.msra.mxu0 %v725
  %797 = vmatpush.msra.mxu0 %v724
  %798 = vmatpush.msra.mxu0 %v723
  %799 = vmatpush.msra.mxu0 %v722
  %800 = vmatmul.f32.gmra.mxu0 %v710
  %v801 = vpop.f32.mrf.mxu0
  %v802 = vadd.f32 %v773, %v801
  %803 = vmatmul.f32.gmra.mxu0 %v713
  %v804 = vpop.f32.mrf.mxu0
  %v805 = vadd.f32 %v776, %v804
  %806 = vmatmul.f32.gmra.mxu0 %v716
  %v807 = vpop.f32.mrf.mxu0
  %v808 = vadd.f32 %v779, %v807
  %809 = vmatmul.f32.gmra.mxu0 %v719
  %v810 = vpop.f32.mrf.mxu0
  %v811 = vadd.f32 %v782, %v810
  %812 = vdwg.mxu0
  %v813 = vld [vmem:[%s4 + $0x5] sm:$0x1]
  %v814 = vperm.slane %v813, 0
  %v815 = vadd.f32 %v802, %v814
  %v816 = vadd.f32 %v805, %v814
  %v817 = vadd.f32 %v808, %v814
  %v818 = vadd.f32 %v811, %v814
  %v819 = vmax.f32 %v815, 0.0
  %v820 = vmax.f32 %v816, 0.0
  %v821 = vmax.f32 %v817, 0.0
  %v822 = vmax.f32 %v818, 0.0
  %823 = vst [vmem:[%s5] sm:$0xff] %v557
  %824 = vst [vmem:[%s5 + $0x18] sm:$0xff] %v558
  %825 = vst [vmem:[%s5 + $0x30] sm:$0xff] %v559
  %826 = vst [vmem:[%s5 + $0x48] sm:$0xff] %v560
  %827 = vst [vmem:[%s5 + $0x8] sm:$0xff] %v688
  %828 = vst [vmem:[%s5 + $0x20] sm:$0xff] %v689
  %829 = vst [vmem:[%s5 + $0x38] sm:$0xff] %v690
  %830 = vst [vmem:[%s5 + $0x50] sm:$0xff] %v691
  %831 = vst [vmem:[%s5 + $0x10] sm:$0xff] %v819
  %832 = vst [vmem:[%s5 + $0x28] sm:$0xff] %v820
  %833 = vst [vmem:[%s5 + $0x40] sm:$0xff] %v821
  %834 = vst [vmem:[%s5 + $0x58] sm:$0xff] %v822
  // Predicated region
  $region22: #{graph_sage_forward.1} parent=0 // pred_check
    _
  $region23: #{graph_sage_forward.1} parent=0 // pred_check_branch
    %836 = sbr.rel (0) target = $region25
  $region24: #{graph_sage_forward.1} parent=0 // pred_region
    _
  $region25: #{graph_sage_forward.1} parent=0 // pred_fallthru
    _
  // Predicated region
  $region26: #{graph_sage_forward.1} parent=0 // pred_check
    _
  $region27: #{graph_sage_forward.1} parent=0 // pred_check_branch
    %838 = sbr.rel (0) target = $region29
  $region28: #{graph_sage_forward.1} parent=0 // pred_region
    _
  $region29: #{graph_sage_forward.1} parent=0 // pred_fallthru
    _

</llo_original>
